<compile_context>
chip_gen: v6e
topology: v6e:2x2x1
jax: 0.10.0
libtpu: 0.0.40
codegen_flags: <defaults>
</compile_context>

<pallas_src>
import functools
import math

import jax
import jax.numpy as jnp
from jax import lax
from jax.experimental import pallas as pl
from jax.experimental.pallas import tpu as pltpu

# ---- config (mirrors SDEnet_configs) ----
DIFFUSION_DEPTH = 6
LATENT_NODES = 16
DIFFUSION_NODES = 32

_MAX_TB = 8192  # keep per-step VMEM well under the 16 MiB scoped default (v5e)


def _round_up(n, m):
    return ((n + m - 1) // m) * m


def diffusion_kernel(x_ref, wdt_ref, bdt_ref, wfc_ref, bfc_ref, wdn_ref, bdn_ref,
                     o_ref, *, depth, deltat):
    # x_ref is (TB, LATENT); all compute is feature-major so the batch dimension
    # sits on the 128-wide lane axis and the width-1 head is a lane-dense store.
    x_blk = x_ref[...]                                    # (TB, LATENT)
    tb = o_ref.shape[1]

    def lane_tile(v):
        # v is (rows, 128), lane-replicated on the host.  Expanding to (rows, tb)
        # is a static concat of aligned 128-lane tiles (vreg copies, no XLU splat).
        reps = tb // 128
        return v if reps == 1 else jnp.concatenate([v] * reps, axis=1)

    bdt = lane_tile(bdt_ref[...])                         # (DIFF, TB)
    bfc = lane_tile(bfc_ref[...])                         # (DIFF, TB), hoisted
    wdn = lane_tile(wdn_ref[...])                         # (DIFF, TB)

    # diffusion_transform: contract the LATENT dims of (DIFF, LATENT) x (TB, LATENT)
    # -> (DIFF, TB); the x transpose is handled in-VMEM by the MXU/XLU path.
    out = lax.dot_general(
        wdt_ref[...], x_blk,
        dimension_numbers=(((1,), (1,)), ((), ())),
        preferred_element_type=jnp.float32,
        precision=lax.Precision.DEFAULT) + bdt

    wfc = wfc_ref[...]                                    # (DIFF, DIFF), resident

    # Euler steps: out = out + fc(out) * deltat   (same op order as the module)
    def body(_, out):
        fc_out = jnp.dot(wfc, out,
                         preferred_element_type=jnp.float32,
                         precision=lax.Precision.DEFAULT) + bfc
        return out + fc_out * deltat

    out = lax.fori_loop(0, depth, body, out, unroll=True)

    # diffusion_node: ReLU -> Linear(DIFF, 1) -> sigmoid.
    # Width-1 projection as VPU multiply + sublane (XLU) reduction, not an N=1
    # MXU matmul; exp goes to the EUP; bias is a scalar read from SMEM.
    h = jnp.maximum(out, 0.0)                             # (DIFF, TB)
    z = jnp.sum(h * wdn, axis=0, keepdims=True) + bdn_ref[0, 0]   # (1, TB)
    o_ref[...] = 1.0 / (1.0 + jnp.exp(-z))                # lane-dense (1, TB) store


def diffusion_forward(x, w_dt, b_dt, w_fc, b_fc, w_dn, b_dn,
                      *, depth=DIFFUSION_DEPTH, block_b=4096):
    """x: (B, LATENT_NODES) float32.  Returns (B, 1) float32."""
    B = x.shape[0]
    deltat = 1.0 / depth

    # Batch tile: multiple of 128 lanes, large enough to amortize per-step
    # overhead, capped so VMEM stays small and the grid keeps >=2 steps (v7x
    # has 2 TensorCores sharding the "parallel" axis).
    b_pad128 = _round_up(B, 128)
    tb = min(_round_up(block_b, 128), b_pad128, _MAX_TB)
    if b_pad128 >= 2 * 128:
        tb = min(tb, _round_up(b_pad128 // 2, 128))
    b_pad = _round_up(B, tb)
    if b_pad != B:
        # Padded rows produce harmless finite values that are sliced off below.
        x = jnp.pad(x, ((0, b_pad - B), (0, 0)))

    # Replicate the 1-lane-wide columns to lane width once (tiny host-side op).
    ones = jnp.ones((1, 128), jnp.float32)
    b_dt_l = b_dt * ones                                  # (DIFF, 128)
    b_fc_l = b_fc * ones                                  # (DIFF, 128)
    w_dn_l = w_dn * ones                                  # (DIFF, 128)
    b_dn_s = jnp.asarray(b_dn, jnp.float32).reshape(1, 1) # scalar -> SMEM

    grid = (b_pad // tb,)

    def resident(shape):
        return pl.BlockSpec(shape, lambda i: (0, 0))

    flops = int(2 * b_pad * (LATENT_NODES * DIFFUSION_NODES
                             + depth * DIFFUSION_NODES * DIFFUSION_NODES
                             + DIFFUSION_NODES))
    bytes_accessed = int(b_pad * LATENT_NODES * 4 + b_pad * 4
                         + 4 * (LATENT_NODES * DIFFUSION_NODES
                                + DIFFUSION_NODES * DIFFUSION_NODES
                                + 3 * DIFFUSION_NODES * 128 + 1))

    kernel = functools.partial(diffusion_kernel, depth=depth, deltat=deltat)
    y_t = pl.pallas_call(
        kernel,
        out_shape=jax.ShapeDtypeStruct((1, b_pad), jnp.float32),
        grid=grid,
        in_specs=[
            pl.BlockSpec((tb, LATENT_NODES), lambda i: (i, 0)),    # x (streamed)
            resident((DIFFUSION_NODES, LATENT_NODES)),             # w_dt
            resident((DIFFUSION_NODES, 128)),                      # b_dt (lane-rep)
            resident((DIFFUSION_NODES, DIFFUSION_NODES)),          # w_fc
            resident((DIFFUSION_NODES, 128)),                      # b_fc (lane-rep)
            resident((DIFFUSION_NODES, 128)),                      # w_dn (lane-rep)
            pl.BlockSpec(memory_space=pltpu.MemorySpace.SMEM),     # b_dn scalar
        ],
        out_specs=pl.BlockSpec((1, tb), lambda i: (0, i)),
        compiler_params=pltpu.CompilerParams(
            dimension_semantics=("parallel",)),
        cost_estimate=pl.CostEstimate(flops=flops,
                                      transcendentals=int(b_pad),
                                      bytes_accessed=bytes_accessed),
    )(x, w_dt, b_dt_l, w_fc, b_fc_l, w_dn_l, b_dn_s)

    return y_t[0, :B][:, None]                            # (B, 1)


def init_params(key):
    """PyTorch-Linear-style uniform init, stored in kernel (feature-major) layouts."""
    k = jax.random.split(key, 6)

    def uniform(kk, shape, fan_in):
        bound = 1.0 / math.sqrt(fan_in)
        return jax.random.uniform(kk, shape, jnp.float32, -bound, bound)

    # PyTorch Linear weight layout is (out_features, in_features).
    w_dt = uniform(k[0], (DIFFUSION_NODES, LATENT_NODES), LATENT_NODES)
    b_dt = uniform(k[1], (DIFFUSION_NODES, 1), LATENT_NODES)
    w_fc = uniform(k[2], (DIFFUSION_NODES, DIFFUSION_NODES), DIFFUSION_NODES)
    b_fc = uniform(k[3], (DIFFUSION_NODES, 1), DIFFUSION_NODES)
    w_dn = uniform(k[4], (DIFFUSION_NODES, 1), DIFFUSION_NODES)   # (1,32) weight, transposed
    b_dn = uniform(k[5], (1, 1), DIFFUSION_NODES)
    return w_dt, b_dt, w_fc, b_fc, w_dn, b_dn


def reference_forward(x, w_dt, b_dt, w_fc, b_fc, w_dn, b_dn, depth=DIFFUSION_DEPTH):
    """Plain-JAX reference implementing the original module math."""
    deltat = 1.0 / depth
    out = x @ w_dt.T + b_dt.T                 # (B, DIFF)
    for _ in range(depth):
        out = out + (out @ w_fc.T + b_fc.T) * deltat
    h = jnp.maximum(out, 0.0)
    z = jnp.sum(h * w_dn.T, axis=-1, keepdims=True) + b_dn   # Linear(DIFF, 1)
    return 1.0 / (1.0 + jnp.exp(-z))


if __name__ == "__main__":
    key = jax.random.PRNGKey(0)
    k_x, k_p = jax.random.split(key)
    params = init_params(k_p)

    # B=200: exercises padding + a 2-step grid (tb=128, lane-tile reps=1).
    # B=1000: exercises the multi-tile lane-replication path (tb=512, reps=4).
    for B in (200, 1000):
        x = jax.random.normal(jax.random.fold_in(k_x, B),
                              (B, LATENT_NODES), jnp.float32)
        y = jax.block_until_ready(diffusion_forward(x, *params))
        y_ref = reference_forward(x, *params)
        assert y.shape == (B, 1), y.shape
        assert bool(jnp.all(jnp.isfinite(y)))
        assert jnp.allclose(y, y_ref, atol=1e-4, rtol=1e-4), (
            float(jnp.max(jnp.abs(y - y_ref))))
    print("KERNEL_OK")
</pallas_src>

<mosaic_0001>
module attributes {stable_mosaic.version = 11 : i64} {
  func.func @diffusion_kernel(%arg0: i32, %arg1: memref<128x16xf32, #tpu.memory_space<vmem>>, %arg2: memref<32x16xf32, #tpu.memory_space<vmem>>, %arg3: memref<32x128xf32, #tpu.memory_space<vmem>>, %arg4: memref<32x32xf32, #tpu.memory_space<vmem>>, %arg5: memref<32x128xf32, #tpu.memory_space<vmem>>, %arg6: memref<32x128xf32, #tpu.memory_space<vmem>>, %arg7: memref<1x1xf32, #tpu.memory_space<smem>>, %arg8: memref<1x128xf32, #tpu.memory_space<vmem>>) attributes {dimension_semantics = [#tpu.dimension_semantics<parallel>], iteration_bounds = array<i64: 2>, scalar_prefetch = 0 : i64, scratch_operands = 0 : i64, tpu.core_type = #tpu.core_type<tc>, window_params = [{transform_indices = @transform_0, window_bounds = array<i64: 128, 16>}, {pipeline_mode = #tpu.pipeline_mode<synchronous>, transform_indices = @transform_1, window_bounds = array<i64: 32, 16>}, {pipeline_mode = #tpu.pipeline_mode<synchronous>, transform_indices = @transform_2, window_bounds = array<i64: 32, 128>}, {pipeline_mode = #tpu.pipeline_mode<synchronous>, transform_indices = @transform_3, window_bounds = array<i64: 32, 32>}, {pipeline_mode = #tpu.pipeline_mode<synchronous>, transform_indices = @transform_4, window_bounds = array<i64: 32, 128>}, {pipeline_mode = #tpu.pipeline_mode<synchronous>, transform_indices = @transform_5, window_bounds = array<i64: 32, 128>}, {transform_indices = @transform_6, window_bounds = array<i64: 1, 1>}, {transform_indices = @transform_7, window_bounds = array<i64: 1, 128>}]} {
    %c0 = arith.constant 0 : index
    %c0_0 = arith.constant 0 : index
    %0 = vector.load %arg1[%c0, %c0_0] : memref<128x16xf32, #tpu.memory_space<vmem>>, vector<128x16xf32>
    %c0_1 = arith.constant 0 : index
    %c0_2 = arith.constant 0 : index
    %1 = vector.load %arg3[%c0_1, %c0_2] : memref<32x128xf32, #tpu.memory_space<vmem>>, vector<32x128xf32>
    %c0_3 = arith.constant 0 : index
    %c0_4 = arith.constant 0 : index
    %2 = vector.load %arg5[%c0_3, %c0_4] : memref<32x128xf32, #tpu.memory_space<vmem>>, vector<32x128xf32>
    %c0_5 = arith.constant 0 : index
    %c0_6 = arith.constant 0 : index
    %3 = vector.load %arg6[%c0_5, %c0_6] : memref<32x128xf32, #tpu.memory_space<vmem>>, vector<32x128xf32>
    %c0_7 = arith.constant 0 : index
    %c0_8 = arith.constant 0 : index
    %4 = vector.load %arg2[%c0_7, %c0_8] : memref<32x16xf32, #tpu.memory_space<vmem>>, vector<32x16xf32>
    %cst = arith.constant dense<0.000000e+00> : vector<32x128xf32>
    %5 = tpu.matmul %4, %0, %cst {dimension_numbers = #tpu.dot_dimension_numbers<[1], [1], [0], [0], [0, 0, 1, 0], [], []>} : vector<32x16xf32>, vector<128x16xf32>, vector<32x128xf32> -> vector<32x128xf32>
    %6 = arith.addf %5, %1 : vector<32x128xf32>
    %c0_9 = arith.constant 0 : index
    %c0_10 = arith.constant 0 : index
    %7 = vector.load %arg4[%c0_9, %c0_10] : memref<32x32xf32, #tpu.memory_space<vmem>>, vector<32x32xf32>
    %c0_i32 = arith.constant 0 : i32
    %cst_11 = arith.constant dense<0.000000e+00> : vector<32x128xf32>
    %8 = tpu.matmul %7, %6, %cst_11 {dimension_numbers = #tpu.dot_dimension_numbers<[1], [0], [0], [1], [0, 0, 1, 1], [], []>} : vector<32x32xf32>, vector<32x128xf32>, vector<32x128xf32> -> vector<32x128xf32>
    %9 = arith.addf %8, %2 : vector<32x128xf32>
    %cst_12 = arith.constant 0.166666672 : f32
    %10 = vector.broadcast %cst_12 : f32 to vector<32x128xf32>
    %11 = arith.mulf %9, %10 : vector<32x128xf32>
    %12 = arith.addf %6, %11 : vector<32x128xf32>
    %c1_i32 = arith.constant 1 : i32
    %cst_13 = arith.constant dense<0.000000e+00> : vector<32x128xf32>
    %13 = tpu.matmul %7, %12, %cst_13 {dimension_numbers = #tpu.dot_dimension_numbers<[1], [0], [0], [1], [0, 0, 1, 1], [], []>} : vector<32x32xf32>, vector<32x128xf32>, vector<32x128xf32> -> vector<32x128xf32>
    %14 = arith.addf %13, %2 : vector<32x128xf32>
    %cst_14 = arith.constant 0.166666672 : f32
    %15 = vector.broadcast %cst_14 : f32 to vector<32x128xf32>
    %16 = arith.mulf %14, %15 : vector<32x128xf32>
    %17 = arith.addf %12, %16 : vector<32x128xf32>
    %c2_i32 = arith.constant 2 : i32
    %cst_15 = arith.constant dense<0.000000e+00> : vector<32x128xf32>
    %18 = tpu.matmul %7, %17, %cst_15 {dimension_numbers = #tpu.dot_dimension_numbers<[1], [0], [0], [1], [0, 0, 1, 1], [], []>} : vector<32x32xf32>, vector<32x128xf32>, vector<32x128xf32> -> vector<32x128xf32>
    %19 = arith.addf %18, %2 : vector<32x128xf32>
    %cst_16 = arith.constant 0.166666672 : f32
    %20 = vector.broadcast %cst_16 : f32 to vector<32x128xf32>
    %21 = arith.mulf %19, %20 : vector<32x128xf32>
    %22 = arith.addf %17, %21 : vector<32x128xf32>
    %c3_i32 = arith.constant 3 : i32
    %cst_17 = arith.constant dense<0.000000e+00> : vector<32x128xf32>
    %23 = tpu.matmul %7, %22, %cst_17 {dimension_numbers = #tpu.dot_dimension_numbers<[1], [0], [0], [1], [0, 0, 1, 1], [], []>} : vector<32x32xf32>, vector<32x128xf32>, vector<32x128xf32> -> vector<32x128xf32>
    %24 = arith.addf %23, %2 : vector<32x128xf32>
    %cst_18 = arith.constant 0.166666672 : f32
    %25 = vector.broadcast %cst_18 : f32 to vector<32x128xf32>
    %26 = arith.mulf %24, %25 : vector<32x128xf32>
    %27 = arith.addf %22, %26 : vector<32x128xf32>
    %c4_i32 = arith.constant 4 : i32
    %cst_19 = arith.constant dense<0.000000e+00> : vector<32x128xf32>
    %28 = tpu.matmul %7, %27, %cst_19 {dimension_numbers = #tpu.dot_dimension_numbers<[1], [0], [0], [1], [0, 0, 1, 1], [], []>} : vector<32x32xf32>, vector<32x128xf32>, vector<32x128xf32> -> vector<32x128xf32>
    %29 = arith.addf %28, %2 : vector<32x128xf32>
    %cst_20 = arith.constant 0.166666672 : f32
    %30 = vector.broadcast %cst_20 : f32 to vector<32x128xf32>
    %31 = arith.mulf %29, %30 : vector<32x128xf32>
    %32 = arith.addf %27, %31 : vector<32x128xf32>
    %c5_i32 = arith.constant 5 : i32
    %cst_21 = arith.constant dense<0.000000e+00> : vector<32x128xf32>
    %33 = tpu.matmul %7, %32, %cst_21 {dimension_numbers = #tpu.dot_dimension_numbers<[1], [0], [0], [1], [0, 0, 1, 1], [], []>} : vector<32x32xf32>, vector<32x128xf32>, vector<32x128xf32> -> vector<32x128xf32>
    %34 = arith.addf %33, %2 : vector<32x128xf32>
    %cst_22 = arith.constant 0.166666672 : f32
    %35 = vector.broadcast %cst_22 : f32 to vector<32x128xf32>
    %36 = arith.mulf %34, %35 : vector<32x128xf32>
    %37 = arith.addf %32, %36 : vector<32x128xf32>
    %cst_23 = arith.constant 0.000000e+00 : f32
    %38 = vector.broadcast %cst_23 : f32 to vector<32x128xf32>
    %39 = arith.maximumf %37, %38 : vector<32x128xf32>
    %40 = arith.mulf %39, %3 : vector<32x128xf32>
    %cst_24 = arith.constant dense<0.000000e+00> : vector<128xf32>
    %41 = vector.multi_reduction <add>, %40, %cst_24 [0] : vector<32x128xf32> to vector<128xf32>
    %42 = vector.shape_cast %41 : vector<128xf32> to vector<1x128xf32>
    %c0_25 = arith.constant 0 : index
    %c0_26 = arith.constant 0 : index
    %43 = memref.load %arg7[%c0_25, %c0_26] : memref<1x1xf32, #tpu.memory_space<smem>>
    %44 = vector.broadcast %43 : f32 to vector<1x128xf32>
    %45 = arith.addf %42, %44 : vector<1x128xf32>
    %cst_27 = arith.constant 0.000000e+00 : f32
    %46 = vector.broadcast %cst_27 : f32 to vector<1x128xf32>
    %47 = arith.subf %46, %45 : vector<1x128xf32>
    %48 = math.exp %47 : vector<1x128xf32>
    %cst_28 = arith.constant 1.000000e+00 : f32
    %49 = vector.broadcast %cst_28 : f32 to vector<1x128xf32>
    %50 = arith.addf %49, %48 : vector<1x128xf32>
    %cst_29 = arith.constant 1.000000e+00 : f32
    %51 = vector.broadcast %cst_29 : f32 to vector<1x128xf32>
    %52 = arith.divf %51, %50 : vector<1x128xf32>
    %c0_30 = arith.constant 0 : index
    %c0_31 = arith.constant 0 : index
    %53 = vector.load %arg8[%c0_30, %c0_31] : memref<1x128xf32, #tpu.memory_space<vmem>>, vector<1x128xf32>
    tpu.vector_store %arg8[%c0_30, %c0_31], %52 {strides = array<i32>} : memref<1x128xf32, #tpu.memory_space<vmem>>, vector<1x128xf32>,
    return
  }
  func.func @transform_0(%arg0: i32) -> (i32, i32) {
    %c0_i32 = arith.constant 0 : i32
    %c0_i32_0 = arith.constant 0 : i32
    return %arg0, %c0_i32 : i32, i32
  }
  func.func @transform_1(%arg0: i32) -> (i32, i32) {
    %c0_i32 = arith.constant 0 : i32
    %c0_i32_0 = arith.constant 0 : i32
    %c0_i32_1 = arith.constant 0 : i32
    return %c0_i32, %c0_i32_0 : i32, i32
  }
  func.func @transform_2(%arg0: i32) -> (i32, i32) {
    %c0_i32 = arith.constant 0 : i32
    %c0_i32_0 = arith.constant 0 : i32
    %c0_i32_1 = arith.constant 0 : i32
    return %c0_i32, %c0_i32_0 : i32, i32
  }
  func.func @transform_3(%arg0: i32) -> (i32, i32) {
    %c0_i32 = arith.constant 0 : i32
    %c0_i32_0 = arith.constant 0 : i32
    %c0_i32_1 = arith.constant 0 : i32
    return %c0_i32, %c0_i32_0 : i32, i32
  }
  func.func @transform_4(%arg0: i32) -> (i32, i32) {
    %c0_i32 = arith.constant 0 : i32
    %c0_i32_0 = arith.constant 0 : i32
    %c0_i32_1 = arith.constant 0 : i32
    return %c0_i32, %c0_i32_0 : i32, i32
  }
  func.func @transform_5(%arg0: i32) -> (i32, i32) {
    %c0_i32 = arith.constant 0 : i32
    %c0_i32_0 = arith.constant 0 : i32
    %c0_i32_1 = arith.constant 0 : i32
    return %c0_i32, %c0_i32_0 : i32, i32
  }
  func.func @transform_6(%arg0: i32) -> (i32, i32) {
    %c0_i32 = arith.constant 0 : i32
    %c0_i32_0 = arith.constant 0 : i32
    %c0_i32_1 = arith.constant 0 : i32
    return %c0_i32, %c0_i32_0 : i32, i32
  }
  func.func @transform_7(%arg0: i32) -> (i32, i32) {
    %c0_i32 = arith.constant 0 : i32
    %c0_i32_0 = arith.constant 0 : i32
    return %c0_i32, %arg0 : i32, i32
  }
}

</mosaic_0001>

<llo_original>
// kernel: tpu_custom_call.1
$region0: #{tpu_custom_call.1}
  #allocation0 [shape = 'u32[]', space=smem, size = 0x4, offset = 0x4, fixed_abs, tag = 'smem constant byte address 0x4 - core index']
  #allocation1 [shape = 'u32[144,128]{1,0:T(1,128)}', space=vmem, size = 0x12000, scoped, tag = 'internal scratch']
  #allocation2 [shape = 'f32[1,1]{1,0:T(1,128)S(6)}', space=smem, size = 0x200, scoped, tag = 'scoped memory for tpu_custom_call.1']
  %s0 = inlined_call_operand.vmem [shape: f32[256,16], index: 0, kind: input, shape index: {}]
  %s1 = inlined_call_operand.vmem [shape: f32[32,16], index: 1, kind: input, shape index: {}]
  %s2 = inlined_call_operand.vmem [shape: f32[32,128], index: 2, kind: input, shape index: {}]
  %s3 = inlined_call_operand.vmem [shape: f32[32,32], index: 3, kind: input, shape index: {}]
  %s4 = inlined_call_operand.vmem [shape: f32[32,128], index: 4, kind: input, shape index: {}]
  %s5 = inlined_call_operand.vmem [shape: f32[32,128], index: 5, kind: input, shape index: {}]
  %s6 = inlined_call_operand.<no memory space> [shape: f32[1,1], index: 6, kind: input, shape index: {}]
  %s7 = inlined_call_operand.hbm [shape: f32[1,256], index: 7, kind: output, shape index: {}]
  %s8 = sld [smem:[#allocation0]]
  $region61: #{tpu_custom_call.1} parent=0
    _
  %s10 = ssub.s32 1, %s8
  %s11 = scalar_select 0, %s10, %s8
  %12 = sst [smem:[#allocation2]] %s6
  $region1: #{tpu_custom_call.1} parent=0
    #allocation3 [shape = 'u8[1024]{0}', space=vmem, size = 0x400, scoped, tag = 'output window, operand 0']
    #allocation4 [shape = 's32[2]{0}', space=sflag, size = 0x8, scoped, tag = 'scoped memory for tpu_custom_call.1']
    %13 = vsyncpa [#allocation4], 0
    %s14 = scalar_lea.sflag [#allocation4], 1
    %15 = vsyncpa %s14, 0
    loop: start=0, step=1, limit=4
    $region2: #{tpu_custom_call.1} parent=1 // loop_pre_header
      _
    $region3: #{tpu_custom_call.1} parent=1 // loop_header
      %s17 = sphi 0, %s21
      %p18 = scmp.ge.s32.totalorder %s17, 4
      %s27 = sphi 0, %s29
      %s30 = sphi 0, %s27
      %s31 = sphi 0, %s30
      %s47 = sphi 0, %s31
      %s51 = sphi 0, %s51
      %s53 = sphi 0, %s51
      %s54 = sphi 0, %s53
      %s68 = sphi 0, %s54
      %s72 = sphi 0, %s72
      %s74 = sphi 0, %s72
      %s75 = sphi 0, %s74
      %s89 = sphi 0, %s75
      %s93 = sphi 0, %s93
      %s95 = sphi 0, %s93
      %s96 = sphi 0, %s95
      %s110 = sphi 0, %s96
      %s114 = sphi 0, %s114
      %s116 = sphi 0, %s114
      %s117 = sphi 0, %s116
      %s131 = sphi 0, %s117
      %s135 = sphi 0, %s135
      %s137 = sphi 0, %s135
      %s138 = sphi 0, %s137
      %s152 = sphi 0, %s138
      %s156 = sphi 0, %s156
      %s158 = sphi 0, %s156
      %s159 = sphi 0, %s158
      %s173 = sphi 0, %s159
      %s179 = sphi 0, %s181
      %s182 = sphi 0, %s179
      %s183 = sphi 0, %s182
      %s199 = sphi 0, %s183
    $region4: #{tpu_custom_call.1} parent=1 // loop_header_branch
      %20 = sbr.rel (%p18) target = $region8
    $region5: #{tpu_custom_call.1} parent=1 // loop_body
      %s22 = ssub.s32 %s17, 1
      %s23 = ssub.s32 %s17, 2
      %s24 = sadd.s32 %s17, 1
      %s25 = ssub.s32 %s17, %s24
      %p26 = scmp.eq.s32.totalorder %s25, 0
      %s28 = sadd.s32 %s27, 1
      %s29 = scalar_select %p26, %s27, %s28
      %p32 = pneg %p26
      %p33 = scmp.eq.s32.totalorder %s17, 1
      %p34 = por %p32, %p33
      %p35 = scmp.ne.s32.totalorder %s27, %s30
      %p36 = scmp.eq.s32.totalorder %s17, 0
      %p37 = por %p35, %p36
      %p38 = scmp.ne.s32.totalorder %s27, %s30
      %p39 = scmp.eq.s32.totalorder %s22, 1
      %p40 = por %p38, %p39
      %p41 = scmp.ne.s32.totalorder %s30, %s31
      %p42 = scmp.eq.s32.totalorder %s22, 0
      %p43 = por %p41, %p42
      %p44 = scmp.ne.s32.totalorder %s30, %s31
      %p45 = scmp.eq.s32.totalorder %s23, 1
      %p46 = por %p44, %p45
      %p48 = scmp.ne.s32.totalorder %s31, %s47
      %p49 = scmp.eq.s32.totalorder %s23, 0
      %p50 = por %p48, %p49
      %s52 = sadd.s32 %s51, 1
      %p55 = scmp.eq.s32.totalorder %s17, 1
      %p56 = scmp.ne.s32.totalorder %s51, %s53
      %p57 = scmp.eq.s32.totalorder %s17, 0
      %p58 = por %p56, %p57
      %p59 = scmp.ne.s32.totalorder %s51, %s53
      %p60 = scmp.eq.s32.totalorder %s22, 1
      %p61 = por %p59, %p60
      %p62 = scmp.ne.s32.totalorder %s53, %s54
      %p63 = scmp.eq.s32.totalorder %s22, 0
      %p64 = por %p62, %p63
      %p65 = scmp.ne.s32.totalorder %s53, %s54
      %p66 = scmp.eq.s32.totalorder %s23, 1
      %p67 = por %p65, %p66
      %p69 = scmp.ne.s32.totalorder %s54, %s68
      %p70 = scmp.eq.s32.totalorder %s23, 0
      %p71 = por %p69, %p70
      %s73 = sadd.s32 %s72, 1
      %p76 = scmp.eq.s32.totalorder %s17, 1
      %p77 = scmp.ne.s32.totalorder %s72, %s74
      %p78 = scmp.eq.s32.totalorder %s17, 0
      %p79 = por %p77, %p78
      %p80 = scmp.ne.s32.totalorder %s72, %s74
      %p81 = scmp.eq.s32.totalorder %s22, 1
      %p82 = por %p80, %p81
      %p83 = scmp.ne.s32.totalorder %s74, %s75
      %p84 = scmp.eq.s32.totalorder %s22, 0
      %p85 = por %p83, %p84
      %p86 = scmp.ne.s32.totalorder %s74, %s75
      %p87 = scmp.eq.s32.totalorder %s23, 1
      %p88 = por %p86, %p87
      %p90 = scmp.ne.s32.totalorder %s75, %s89
      %p91 = scmp.eq.s32.totalorder %s23, 0
      %p92 = por %p90, %p91
      %s94 = sadd.s32 %s93, 1
      %p97 = scmp.eq.s32.totalorder %s17, 1
      %p98 = scmp.ne.s32.totalorder %s93, %s95
      %p99 = scmp.eq.s32.totalorder %s17, 0
      %p100 = por %p98, %p99
      %p101 = scmp.ne.s32.totalorder %s93, %s95
      %p102 = scmp.eq.s32.totalorder %s22, 1
      %p103 = por %p101, %p102
      %p104 = scmp.ne.s32.totalorder %s95, %s96
      %p105 = scmp.eq.s32.totalorder %s22, 0
      %p106 = por %p104, %p105
      %p107 = scmp.ne.s32.totalorder %s95, %s96
      %p108 = scmp.eq.s32.totalorder %s23, 1
      %p109 = por %p107, %p108
      %p111 = scmp.ne.s32.totalorder %s96, %s110
      %p112 = scmp.eq.s32.totalorder %s23, 0
      %p113 = por %p111, %p112
      %s115 = sadd.s32 %s114, 1
      %p118 = scmp.eq.s32.totalorder %s17, 1
      %p119 = scmp.ne.s32.totalorder %s114, %s116
      %p120 = scmp.eq.s32.totalorder %s17, 0
      %p121 = por %p119, %p120
      %p122 = scmp.ne.s32.totalorder %s114, %s116
      %p123 = scmp.eq.s32.totalorder %s22, 1
      %p124 = por %p122, %p123
      %p125 = scmp.ne.s32.totalorder %s116, %s117
      %p126 = scmp.eq.s32.totalorder %s22, 0
      %p127 = por %p125, %p126
      %p128 = scmp.ne.s32.totalorder %s116, %s117
      %p129 = scmp.eq.s32.totalorder %s23, 1
      %p130 = por %p128, %p129
      %p132 = scmp.ne.s32.totalorder %s117, %s131
      %p133 = scmp.eq.s32.totalorder %s23, 0
      %p134 = por %p132, %p133
      %s136 = sadd.s32 %s135, 1
      %p139 = scmp.eq.s32.totalorder %s17, 1
      %p140 = scmp.ne.s32.totalorder %s135, %s137
      %p141 = scmp.eq.s32.totalorder %s17, 0
      %p142 = por %p140, %p141
      %p143 = scmp.ne.s32.totalorder %s135, %s137
      %p144 = scmp.eq.s32.totalorder %s22, 1
      %p145 = por %p143, %p144
      %p146 = scmp.ne.s32.totalorder %s137, %s138
      %p147 = scmp.eq.s32.totalorder %s22, 0
      %p148 = por %p146, %p147
      %p149 = scmp.ne.s32.totalorder %s137, %s138
      %p150 = scmp.eq.s32.totalorder %s23, 1
      %p151 = por %p149, %p150
      %p153 = scmp.ne.s32.totalorder %s138, %s152
      %p154 = scmp.eq.s32.totalorder %s23, 0
      %p155 = por %p153, %p154
      %s157 = sadd.s32 %s156, 1
      %p160 = scmp.eq.s32.totalorder %s17, 1
      %p161 = scmp.ne.s32.totalorder %s156, %s158
      %p162 = scmp.eq.s32.totalorder %s17, 0
      %p163 = por %p161, %p162
      %p164 = scmp.ne.s32.totalorder %s156, %s158
      %p165 = scmp.eq.s32.totalorder %s22, 1
      %p166 = por %p164, %p165
      %p167 = scmp.ne.s32.totalorder %s158, %s159
      %p168 = scmp.eq.s32.totalorder %s22, 0
      %p169 = por %p167, %p168
      %p170 = scmp.ne.s32.totalorder %s158, %s159
      %p171 = scmp.eq.s32.totalorder %s23, 1
      %p172 = por %p170, %p171
      %p174 = scmp.ne.s32.totalorder %s159, %s173
      %p175 = scmp.eq.s32.totalorder %s23, 0
      %p176 = por %p174, %p175
      %s177 = ssub.s32 %s17, %s24
      %p178 = scmp.eq.s32.totalorder %s177, 0
      %s180 = sadd.s32 %s179, 1
      %s181 = scalar_select %p178, %s179, %s180
      %p184 = pneg %p178
      %p185 = scmp.eq.s32.totalorder %s17, 1
      %p186 = por %p184, %p185
      %p187 = scmp.ne.s32.totalorder %s179, %s182
      %p188 = scmp.eq.s32.totalorder %s17, 0
      %p189 = por %p187, %p188
      %p190 = scmp.ne.s32.totalorder %s179, %s182
      %p191 = scmp.eq.s32.totalorder %s22, 1
      %p192 = por %p190, %p191
      %p193 = scmp.ne.s32.totalorder %s182, %s183
      %p194 = scmp.eq.s32.totalorder %s22, 0
      %p195 = por %p193, %p194
      %p196 = scmp.ne.s32.totalorder %s182, %s183
      %p197 = scmp.eq.s32.totalorder %s23, 1
      %p198 = por %p196, %p197
      %p200 = scmp.ne.s32.totalorder %s183, %s199
      %p201 = scmp.eq.s32.totalorder %s23, 0
      %p202 = por %p200, %p201
      %p203 = scmp.le.s32.totalorder 1, %s17
      %p204 = scmp.lt.s32.totalorder %s17, 3
      %p205 = pnand %p203, %p204
      %p206 = pneg %p205
      // Predicated region
      $region9: #{tpu_custom_call.1} parent=5 // pred_check
        _
      $region10: #{tpu_custom_call.1} parent=5 // pred_check_branch
        %208 = sbr.rel (%p205) target = $region12
      $region11: #{tpu_custom_call.1} parent=5 // pred_region
        %s209 = ssub.s32 %s17, 1
        // Predicated region
        $region13: #{tpu_custom_call.1} parent=11 // pred_check
          %p210 = pneg %p64
        $region14: #{tpu_custom_call.1} parent=11 // pred_check_branch
          %212 = sbr.rel (%p210) target = $region16
        $region15: #{tpu_custom_call.1} parent=11 // pred_region
          _
        $region16: #{tpu_custom_call.1} parent=11 // pred_fallthru
          _
        // Predicated region
        $region17: #{tpu_custom_call.1} parent=11 // pred_check
          %p213 = pneg %p85
        $region18: #{tpu_custom_call.1} parent=11 // pred_check_branch
          %215 = sbr.rel (%p213) target = $region20
        $region19: #{tpu_custom_call.1} parent=11 // pred_region
          _
        $region20: #{tpu_custom_call.1} parent=11 // pred_fallthru
          _
        // Predicated region
        $region21: #{tpu_custom_call.1} parent=11 // pred_check
          %p216 = pneg %p106
        $region22: #{tpu_custom_call.1} parent=11 // pred_check_branch
          %218 = sbr.rel (%p216) target = $region24
        $region23: #{tpu_custom_call.1} parent=11 // pred_region
          _
        $region24: #{tpu_custom_call.1} parent=11 // pred_fallthru
          _
        // Predicated region
        $region25: #{tpu_custom_call.1} parent=11 // pred_check
          %p219 = pneg %p127
        $region26: #{tpu_custom_call.1} parent=11 // pred_check_branch
          %221 = sbr.rel (%p219) target = $region28
        $region27: #{tpu_custom_call.1} parent=11 // pred_region
          _
        $region28: #{tpu_custom_call.1} parent=11 // pred_fallthru
          _
        // Predicated region
        $region29: #{tpu_custom_call.1} parent=11 // pred_check
          %p222 = pneg %p148
        $region30: #{tpu_custom_call.1} parent=11 // pred_check_branch
          %224 = sbr.rel (%p222) target = $region32
        $region31: #{tpu_custom_call.1} parent=11 // pred_region
          _
        $region32: #{tpu_custom_call.1} parent=11 // pred_fallthru
          _
        // Predicated region
        $region33: #{tpu_custom_call.1} parent=11 // pred_check
          %p225 = pneg %p169
        $region34: #{tpu_custom_call.1} parent=11 // pred_check_branch
          %227 = sbr.rel (%p225) target = $region36
        $region35: #{tpu_custom_call.1} parent=11 // pred_region
          _
        $region36: #{tpu_custom_call.1} parent=11 // pred_fallthru
          _
      $region12: #{tpu_custom_call.1} parent=5 // pred_fallthru
        _
      %p228 = scmp.lt.s32.totalorder %s17, 2
      // Predicated region
      $region37: #{tpu_custom_call.1} parent=5 // pred_check
        %p229 = pneg %p228
      $region38: #{tpu_custom_call.1} parent=5 // pred_check_branch
        %231 = sbr.rel (%p229) target = $region40
      $region39: #{tpu_custom_call.1} parent=5 // pred_region
        // Predicated region
        $region41: #{tpu_custom_call.1} parent=39 // pred_check
          %p232 = pneg %p37
        $region42: #{tpu_custom_call.1} parent=39 // pred_check_branch
          %234 = sbr.rel (%p232) target = $region44
        $region43: #{tpu_custom_call.1} parent=39 // pred_region
          %s235 = smul.u32 16, %s17
          %p236 = scmp.lt.s32.totalorder %s235, 31
          %s237 = scalar_select %p236, %s235, 31
          %s238 = smul.addr %s237, 8
          %s239 = scalar_lea.vmem %s0, %s238
          %s240 = smul.u32 16, %s17
        $region44: #{tpu_custom_call.1} parent=39 // pred_fallthru
          _
      $region40: #{tpu_custom_call.1} parent=5 // pred_fallthru
        _
      %p241 = scmp.le.s32.totalorder 1, %s17
      %p242 = scmp.lt.s32.totalorder %s17, 3
      %p243 = pnand %p241, %p242
      %p244 = pneg %p243
      // Predicated region
      $region45: #{tpu_custom_call.1} parent=5 // pred_check
        _
      $region46: #{tpu_custom_call.1} parent=5 // pred_check_branch
        %246 = sbr.rel (%p243) target = $region48
      $region47: #{tpu_custom_call.1} parent=5 // pred_region
        %s247 = ssub.s32 %s17, 1
        %s248 = smul.u32 16, %s22
        %p249 = scmp.lt.s32.totalorder %s248, 31
        %s250 = scalar_select %p249, %s248, 31
        %s251 = smul.addr %s250, 8
        %s252 = scalar_lea.vmem %s0, %s251
        %p253 = pneg %p43
        %p254 = pneg %p40
        %p255 = pneg %p64
        %p256 = pneg %p61
        %p257 = pneg %p85
        %p258 = pneg %p82
        %p259 = pneg %p106
        %p260 = pneg %p103
        %p261 = pneg %p127
        %p262 = pneg %p124
        %p263 = pneg %p148
        %p264 = pneg %p145
        %p265 = pneg %p169
        %p266 = pneg %p166
        %p267 = pneg %p195
        %p268 = pneg %p192
        %s269 = sand.u32 %s182, 1
        %s270 = scalar_lea.sflag [#allocation4], %s269
        %s271 = sand.u32 %s182, 1
        %s272 = scalar_lea.vmem [#allocation3], %s271
        %s273 = smul.u32 16, %s22
        %p274 = scmp.lt.s32.totalorder %s273, 31
        %s275 = scalar_select %p274, %s273, 31
        %s276 = smul.addr %s275, 8
        %s277 = scalar_lea.vmem %s0, %s276
        %s278 = smul.u32 16, %s22
        %v279 = vld [vmem:[%s277] sm:$0xff]
        %v280 = vld [vmem:[%s277 + $0x8] sm:$0xff]
        %v281 = vld [vmem:[%s277 + $0x10] sm:$0xff]
        %v282 = vld [vmem:[%s277 + $0x18] sm:$0xff]
        %v283 = vld [vmem:[%s277 + $0x20] sm:$0xff]
        %v284 = vld [vmem:[%s277 + $0x28] sm:$0xff]
        %v285 = vld [vmem:[%s277 + $0x30] sm:$0xff]
        %v286 = vld [vmem:[%s277 + $0x38] sm:$0xff]
        %v287 = vld [vmem:[%s277 + $0x40] sm:$0xff]
        %v288 = vld [vmem:[%s277 + $0x48] sm:$0xff]
        %v289 = vld [vmem:[%s277 + $0x50] sm:$0xff]
        %v290 = vld [vmem:[%s277 + $0x58] sm:$0xff]
        %v291 = vld [vmem:[%s277 + $0x60] sm:$0xff]
        %v292 = vld [vmem:[%s277 + $0x68] sm:$0xff]
        %v293 = vld [vmem:[%s277 + $0x70] sm:$0xff]
        %v294 = vld [vmem:[%s277 + $0x78] sm:$0xff]
        %v295 = vld [vmem:[%s2] sm:$0xff]
        %v296 = vld [vmem:[%s2 + $0x8] sm:$0xff]
        %v297 = vld [vmem:[%s2 + $0x10] sm:$0xff]
        %v298 = vld [vmem:[%s2 + $0x18] sm:$0xff]
        %v299 = vld [vmem:[%s4] sm:$0xff]
        %v300 = vld [vmem:[%s4 + $0x8] sm:$0xff]
        %v301 = vld [vmem:[%s4 + $0x10] sm:$0xff]
        %v302 = vld [vmem:[%s4 + $0x18] sm:$0xff]
        %v303 = vld [vmem:[%s5] sm:$0xff]
        %v304 = vld [vmem:[%s5 + $0x8] sm:$0xff]
        %v305 = vld [vmem:[%s5 + $0x10] sm:$0xff]
        %v306 = vld [vmem:[%s5 + $0x18] sm:$0xff]
        %v307 = vld [vmem:[%s1] sm:$0xff]
        %v308 = vld [vmem:[%s1 + $0x8] sm:$0xff]
        %v309 = vld [vmem:[%s1 + $0x10] sm:$0xff]
        %v310 = vld [vmem:[%s1 + $0x18] sm:$0xff]
        %vm311 = vcmask 130048
        %v313 = vsel %vm311, %v307, 0
        %v316 = vsel %vm311, %v308, 0
        %v319 = vsel %vm311, %v309, 0
        %v322 = vsel %vm311, %v310, 0
        %v325 = vsel %vm311, %v279, 0
        %v328 = vsel %vm311, %v280, 0
        %v331 = vsel %vm311, %v281, 0
        %v334 = vsel %vm311, %v282, 0
        %v337 = vsel %vm311, %v283, 0
        %v340 = vsel %vm311, %v284, 0
        %v343 = vsel %vm311, %v285, 0
        %v346 = vsel %vm311, %v286, 0
        %v349 = vsel %vm311, %v287, 0
        %v352 = vsel %vm311, %v288, 0
        %v355 = vsel %vm311, %v289, 0
        %v358 = vsel %vm311, %v290, 0
        %v361 = vsel %vm311, %v291, 0
        %v364 = vsel %vm311, %v292, 0
        %v367 = vsel %vm311, %v293, 0
        %v370 = vsel %vm311, %v294, 0
        %372 = vmatprep.subr.mxu0 0.0
        %373 = vmatpush1.xpose.msra.mxu0 %v370
        %374 = vmatprep.subr.mxu0 0.0
        %375 = vmatpush1.xpose.msra.mxu0 %v367
        %376 = vmatprep.subr.mxu0 0.0
        %377 = vmatpush1.xpose.msra.mxu0 %v364
        %378 = vmatprep.subr.mxu0 0.0
        %379 = vmatpush1.xpose.msra.mxu0 %v361
        %380 = vmatprep.subr.mxu0 0.0
        %381 = vmatpush1.xpose.msra.mxu0 %v358
        %382 = vmatprep.subr.mxu0 0.0
        %383 = vmatpush1.xpose.msra.mxu0 %v355
        %384 = vmatprep.subr.mxu0 0.0
        %385 = vmatpush1.xpose.msra.mxu0 %v352
        %386 = vmatprep.subr.mxu0 0.0
        %387 = vmatpush1.xpose.msra.mxu0 %v349
        %388 = vmatprep.subr.mxu0 0.0
        %389 = vmatpush1.xpose.msra.mxu0 %v346
        %390 = vmatprep.subr.mxu0 0.0
        %391 = vmatpush1.xpose.msra.mxu0 %v343
        %392 = vmatprep.subr.mxu0 0.0
        %393 = vmatpush1.xpose.msra.mxu0 %v340
        %394 = vmatprep.subr.mxu0 0.0
        %395 = vmatpush1.xpose.msra.mxu0 %v337
        %396 = vmatprep.subr.mxu0 0.0
        %397 = vmatpush1.xpose.msra.mxu0 %v334
        %398 = vmatprep.subr.mxu0 0.0
        %399 = vmatpush1.xpose.msra.mxu0 %v331
        %400 = vmatprep.subr.mxu0 0.0
        %401 = vmatpush1.xpose.msra.mxu0 %v328
        %402 = vmatprep.subr.mxu0 0.0
        %403 = vmatpush1.xpose.msra.mxu0 %v325
        %404 = vmatprep.subr.mxu0 0.0
        %405 = vmatpush2.xpose.msra.mxu0 0.0
        %406 = vmatprep.subr.mxu0 0.0
        %407 = vmatpush2.xpose.msra.mxu0 0.0
        %408 = vmatprep.subr.mxu0 0.0
        %409 = vmatpush2.xpose.msra.mxu0 0.0
        %410 = vmatprep.subr.mxu0 0.0
        %411 = vmatpush2.xpose.msra.mxu0 0.0
        %412 = vmatprep.subr.mxu0 0.0
        %413 = vmatpush2.xpose.msra.mxu0 0.0
        %414 = vmatprep.subr.mxu0 0.0
        %415 = vmatpush2.xpose.msra.mxu0 0.0
        %416 = vmatprep.subr.mxu0 0.0
        %417 = vmatpush2.xpose.msra.mxu0 0.0
        %418 = vmatprep.subr.mxu0 0.0
        %419 = vmatpush2.xpose.msra.mxu0 0.0
        %420 = vmatprep.subr.mxu0 0.0
        %421 = vmatpush2.xpose.msra.mxu0 0.0
        %422 = vmatprep.subr.mxu0 0.0
        %423 = vmatpush2.xpose.msra.mxu0 0.0
        %424 = vmatprep.subr.mxu0 0.0
        %425 = vmatpush2.xpose.msra.mxu0 0.0
        %426 = vmatprep.subr.mxu0 0.0
        %427 = vmatpush2.xpose.msra.mxu0 0.0
        %428 = vmatprep.subr.mxu0 0.0
        %429 = vmatpush2.xpose.msra.mxu0 0.0
        %430 = vmatprep.subr.mxu0 0.0
        %431 = vmatpush2.xpose.msra.mxu0 0.0
        %432 = vmatprep.subr.mxu0 0.0
        %433 = vmatpush2.xpose.msra.mxu0 0.0
        %434 = vmatprep.subr.mxu0 0.0
        %435 = vmatpush2.xpose.msra.mxu0 0.0
        %436 = vmatprep.mubr.f32.mxu0 0.0
        %437 = vmatmul.mubr.f32.gmra.mxu0 %v313
        %v438 = vpop.f32.mrf.mxu0
        %v439 = vadd.f32 %v295, %v438
        %v440 = vpop.f32.mrf.mxu0
        %441 = vmatprep.mubr.f32.mxu0 0.0
        %442 = vmatmul.mubr.f32.gmra.mxu0 %v316
        %v443 = vpop.f32.mrf.mxu0
        %v444 = vadd.f32 %v296, %v443
        %v445 = vpop.f32.mrf.mxu0
        %446 = vmatprep.mubr.f32.mxu0 0.0
        %447 = vmatmul.mubr.f32.gmra.mxu0 %v319
        %v448 = vpop.f32.mrf.mxu0
        %v449 = vadd.f32 %v297, %v448
        %v450 = vpop.f32.mrf.mxu0
        %451 = vmatprep.mubr.f32.mxu0 0.0
        %452 = vmatmul.mubr.f32.gmra.mxu0 %v322
        %v453 = vpop.f32.mrf.mxu0
        %v454 = vadd.f32 %v298, %v453
        %v455 = vpop.f32.mrf.mxu0
        %456 = vdwg.mxu0
        %v457 = vld [vmem:[%s3] sm:$0xff]
        %v458 = vld [vmem:[%s3 + $0x8] sm:$0xff]
        %v459 = vld [vmem:[%s3 + $0x10] sm:$0xff]
        %v460 = vld [vmem:[%s3 + $0x18] sm:$0xff]
        %vm461 = vcmask 261120
        %v463 = vsel %vm461, %v457, 0
        %v466 = vsel %vm461, %v458, 0
        %v469 = vsel %vm461, %v459, 0
        %v472 = vsel %vm461, %v460, 0
        %474 = vmatprep.subr.mxu0 0.0
        %475 = vmatpush1.msra.mxu0 0.0
        %476 = vmatprep.subr.mxu0 0.0
        %477 = vmatpush1.msra.mxu0 0.0
        %478 = vmatprep.subr.mxu0 0.0
        %479 = vmatpush1.msra.mxu0 0.0
        %480 = vmatprep.subr.mxu0 0.0
        %481 = vmatpush1.msra.mxu0 0.0
        %482 = vmatprep.subr.mxu0 0.0
        %483 = vmatpush1.msra.mxu0 0.0
        %484 = vmatprep.subr.mxu0 0.0
        %485 = vmatpush1.msra.mxu0 0.0
        %486 = vmatprep.subr.mxu0 0.0
        %487 = vmatpush1.msra.mxu0 0.0
        %488 = vmatprep.subr.mxu0 0.0
        %489 = vmatpush1.msra.mxu0 0.0
        %490 = vmatprep.subr.mxu0 0.0
        %491 = vmatpush1.msra.mxu0 0.0
        %492 = vmatprep.subr.mxu0 0.0
        %493 = vmatpush1.msra.mxu0 0.0
        %494 = vmatprep.subr.mxu0 0.0
        %495 = vmatpush1.msra.mxu0 0.0
        %496 = vmatprep.subr.mxu0 0.0
        %497 = vmatpush1.msra.mxu0 0.0
        %498 = vmatprep.subr.mxu0 0.0
        %499 = vmatpush1.msra.mxu0 %v454
        %500 = vmatprep.subr.mxu0 0.0
        %501 = vmatpush1.msra.mxu0 %v449
        %502 = vmatprep.subr.mxu0 0.0
        %503 = vmatpush1.msra.mxu0 %v444
        %504 = vmatprep.subr.mxu0 0.0
        %505 = vmatpush1.msra.mxu0 %v439
        %506 = vmatprep.subr.mxu0 0.0
        %507 = vmatpush2.msra.mxu0 0.0
        %508 = vmatprep.subr.mxu0 0.0
        %509 = vmatpush2.msra.mxu0 0.0
        %510 = vmatprep.subr.mxu0 0.0
        %511 = vmatpush2.msra.mxu0 0.0
        %512 = vmatprep.subr.mxu0 0.0
        %513 = vmatpush2.msra.mxu0 0.0
        %514 = vmatprep.subr.mxu0 0.0
        %515 = vmatpush2.msra.mxu0 0.0
        %516 = vmatprep.subr.mxu0 0.0
        %517 = vmatpush2.msra.mxu0 0.0
        %518 = vmatprep.subr.mxu0 0.0
        %519 = vmatpush2.msra.mxu0 0.0
        %520 = vmatprep.subr.mxu0 0.0
        %521 = vmatpush2.msra.mxu0 0.0
        %522 = vmatprep.subr.mxu0 0.0
        %523 = vmatpush2.msra.mxu0 0.0
        %524 = vmatprep.subr.mxu0 0.0
        %525 = vmatpush2.msra.mxu0 0.0
        %526 = vmatprep.subr.mxu0 0.0
        %527 = vmatpush2.msra.mxu0 0.0
        %528 = vmatprep.subr.mxu0 0.0
        %529 = vmatpush2.msra.mxu0 0.0
        %530 = vmatprep.subr.mxu0 0.0
        %531 = vmatpush2.msra.mxu0 0.0
        %532 = vmatprep.subr.mxu0 0.0
        %533 = vmatpush2.msra.mxu0 0.0
        %534 = vmatprep.subr.mxu0 0.0
        %535 = vmatpush2.msra.mxu0 0.0
        %536 = vmatprep.subr.mxu0 0.0
        %537 = vmatpush2.msra.mxu0 0.0
        %538 = vmatprep.mubr.f32.mxu0 0.0
        %539 = vmatmul.mubr.f32.gmra.mxu0 %v463
        %v540 = vpop.f32.mrf.mxu0
        %v541 = vadd.f32 %v299, %v540
        %v542 = vpop.f32.mrf.mxu0
        %543 = vmatprep.mubr.f32.mxu0 0.0
        %544 = vmatmul.mubr.f32.gmra.mxu0 %v466
        %v545 = vpop.f32.mrf.mxu0
        %v546 = vadd.f32 %v300, %v545
        %v547 = vpop.f32.mrf.mxu0
        %548 = vmatprep.mubr.f32.mxu0 0.0
        %549 = vmatmul.mubr.f32.gmra.mxu0 %v469
        %v550 = vpop.f32.mrf.mxu0
        %v551 = vadd.f32 %v301, %v550
        %v552 = vpop.f32.mrf.mxu0
        %553 = vmatprep.mubr.f32.mxu0 0.0
        %554 = vmatmul.mubr.f32.gmra.mxu0 %v472
        %v555 = vpop.f32.mrf.mxu0
        %v556 = vadd.f32 %v302, %v555
        %v557 = vpop.f32.mrf.mxu0
        %558 = vdwg.mxu0
        %v559 = vmul.f32 %v541, 0.16666667
        %v560 = vmul.f32 %v546, 0.16666667
        %v561 = vmul.f32 %v551, 0.16666667
        %v562 = vmul.f32 %v556, 0.16666667
        %v563 = vadd.f32 %v439, %v559
        %v564 = vadd.f32 %v444, %v560
        %v565 = vadd.f32 %v449, %v561
        %v566 = vadd.f32 %v454, %v562
        %567 = vmatprep.subr.mxu0 0.0
        %568 = vmatpush1.msra.mxu0 0.0
        %569 = vmatprep.subr.mxu0 0.0
        %570 = vmatpush1.msra.mxu0 0.0
        %571 = vmatprep.subr.mxu0 0.0
        %572 = vmatpush1.msra.mxu0 0.0
        %573 = vmatprep.subr.mxu0 0.0
        %574 = vmatpush1.msra.mxu0 0.0
        %575 = vmatprep.subr.mxu0 0.0
        %576 = vmatpush1.msra.mxu0 0.0
        %577 = vmatprep.subr.mxu0 0.0
        %578 = vmatpush1.msra.mxu0 0.0
        %579 = vmatprep.subr.mxu0 0.0
        %580 = vmatpush1.msra.mxu0 0.0
        %581 = vmatprep.subr.mxu0 0.0
        %582 = vmatpush1.msra.mxu0 0.0
        %583 = vmatprep.subr.mxu0 0.0
        %584 = vmatpush1.msra.mxu0 0.0
        %585 = vmatprep.subr.mxu0 0.0
        %586 = vmatpush1.msra.mxu0 0.0
        %587 = vmatprep.subr.mxu0 0.0
        %588 = vmatpush1.msra.mxu0 0.0
        %589 = vmatprep.subr.mxu0 0.0
        %590 = vmatpush1.msra.mxu0 0.0
        %591 = vmatprep.subr.mxu0 0.0
        %592 = vmatpush1.msra.mxu0 %v566
        %593 = vmatprep.subr.mxu0 0.0
        %594 = vmatpush1.msra.mxu0 %v565
        %595 = vmatprep.subr.mxu0 0.0
        %596 = vmatpush1.msra.mxu0 %v564
        %597 = vmatprep.subr.mxu0 0.0
        %598 = vmatpush1.msra.mxu0 %v563
        %599 = vmatprep.subr.mxu0 0.0
        %600 = vmatpush2.msra.mxu0 0.0
        %601 = vmatprep.subr.mxu0 0.0
        %602 = vmatpush2.msra.mxu0 0.0
        %603 = vmatprep.subr.mxu0 0.0
        %604 = vmatpush2.msra.mxu0 0.0
        %605 = vmatprep.subr.mxu0 0.0
        %606 = vmatpush2.msra.mxu0 0.0
        %607 = vmatprep.subr.mxu0 0.0
        %608 = vmatpush2.msra.mxu0 0.0
        %609 = vmatprep.subr.mxu0 0.0
        %610 = vmatpush2.msra.mxu0 0.0
        %611 = vmatprep.subr.mxu0 0.0
        %612 = vmatpush2.msra.mxu0 0.0
        %613 = vmatprep.subr.mxu0 0.0
        %614 = vmatpush2.msra.mxu0 0.0
        %615 = vmatprep.subr.mxu0 0.0
        %616 = vmatpush2.msra.mxu0 0.0
        %617 = vmatprep.subr.mxu0 0.0
        %618 = vmatpush2.msra.mxu0 0.0
        %619 = vmatprep.subr.mxu0 0.0
        %620 = vmatpush2.msra.mxu0 0.0
        %621 = vmatprep.subr.mxu0 0.0
        %622 = vmatpush2.msra.mxu0 0.0
        %623 = vmatprep.subr.mxu0 0.0
        %624 = vmatpush2.msra.mxu0 0.0
        %625 = vmatprep.subr.mxu0 0.0
        %626 = vmatpush2.msra.mxu0 0.0
        %627 = vmatprep.subr.mxu0 0.0
        %628 = vmatpush2.msra.mxu0 0.0
        %629 = vmatprep.subr.mxu0 0.0
        %630 = vmatpush2.msra.mxu0 0.0
        %631 = vmatprep.mubr.f32.mxu0 0.0
        %632 = vmatmul.mubr.f32.gmra.mxu0 %v463
        %v633 = vpop.f32.mrf.mxu0
        %v634 = vadd.f32 %v299, %v633
        %v635 = vpop.f32.mrf.mxu0
        %636 = vmatprep.mubr.f32.mxu0 0.0
        %637 = vmatmul.mubr.f32.gmra.mxu0 %v466
        %v638 = vpop.f32.mrf.mxu0
        %v639 = vadd.f32 %v300, %v638
        %v640 = vpop.f32.mrf.mxu0
        %641 = vmatprep.mubr.f32.mxu0 0.0
        %642 = vmatmul.mubr.f32.gmra.mxu0 %v469
        %v643 = vpop.f32.mrf.mxu0
        %v644 = vadd.f32 %v301, %v643
        %v645 = vpop.f32.mrf.mxu0
        %646 = vmatprep.mubr.f32.mxu0 0.0
        %647 = vmatmul.mubr.f32.gmra.mxu0 %v472
        %v648 = vpop.f32.mrf.mxu0
        %v649 = vadd.f32 %v302, %v648
        %v650 = vpop.f32.mrf.mxu0
        %651 = vdwg.mxu0
        %v652 = vmul.f32 %v634, 0.16666667
        %v653 = vmul.f32 %v639, 0.16666667
        %v654 = vmul.f32 %v644, 0.16666667
        %v655 = vmul.f32 %v649, 0.16666667
        %v656 = vadd.f32 %v563, %v652
        %v657 = vadd.f32 %v564, %v653
        %v658 = vadd.f32 %v565, %v654
        %v659 = vadd.f32 %v566, %v655
        %660 = vmatprep.subr.mxu0 0.0
        %661 = vmatpush1.msra.mxu0 0.0
        %662 = vmatprep.subr.mxu0 0.0
        %663 = vmatpush1.msra.mxu0 0.0
        %664 = vmatprep.subr.mxu0 0.0
        %665 = vmatpush1.msra.mxu0 0.0
        %666 = vmatprep.subr.mxu0 0.0
        %667 = vmatpush1.msra.mxu0 0.0
        %668 = vmatprep.subr.mxu0 0.0
        %669 = vmatpush1.msra.mxu0 0.0
        %670 = vmatprep.subr.mxu0 0.0
        %671 = vmatpush1.msra.mxu0 0.0
        %672 = vmatprep.subr.mxu0 0.0
        %673 = vmatpush1.msra.mxu0 0.0
        %674 = vmatprep.subr.mxu0 0.0
        %675 = vmatpush1.msra.mxu0 0.0
        %676 = vmatprep.subr.mxu0 0.0
        %677 = vmatpush1.msra.mxu0 0.0
        %678 = vmatprep.subr.mxu0 0.0
        %679 = vmatpush1.msra.mxu0 0.0
        %680 = vmatprep.subr.mxu0 0.0
        %681 = vmatpush1.msra.mxu0 0.0
        %682 = vmatprep.subr.mxu0 0.0
        %683 = vmatpush1.msra.mxu0 0.0
        %684 = vmatprep.subr.mxu0 0.0
        %685 = vmatpush1.msra.mxu0 %v659
        %686 = vmatprep.subr.mxu0 0.0
        %687 = vmatpush1.msra.mxu0 %v658
        %688 = vmatprep.subr.mxu0 0.0
        %689 = vmatpush1.msra.mxu0 %v657
        %690 = vmatprep.subr.mxu0 0.0
        %691 = vmatpush1.msra.mxu0 %v656
        %692 = vmatprep.subr.mxu0 0.0
        %693 = vmatpush2.msra.mxu0 0.0
        %694 = vmatprep.subr.mxu0 0.0
        %695 = vmatpush2.msra.mxu0 0.0
        %696 = vmatprep.subr.mxu0 0.0
        %697 = vmatpush2.msra.mxu0 0.0
        %698 = vmatprep.subr.mxu0 0.0
        %699 = vmatpush2.msra.mxu0 0.0
        %700 = vmatprep.subr.mxu0 0.0
        %701 = vmatpush2.msra.mxu0 0.0
        %702 = vmatprep.subr.mxu0 0.0
        %703 = vmatpush2.msra.mxu0 0.0
        %704 = vmatprep.subr.mxu0 0.0
        %705 = vmatpush2.msra.mxu0 0.0
        %706 = vmatprep.subr.mxu0 0.0
        %707 = vmatpush2.msra.mxu0 0.0
        %708 = vmatprep.subr.mxu0 0.0
        %709 = vmatpush2.msra.mxu0 0.0
        %710 = vmatprep.subr.mxu0 0.0
        %711 = vmatpush2.msra.mxu0 0.0
        %712 = vmatprep.subr.mxu0 0.0
        %713 = vmatpush2.msra.mxu0 0.0
        %714 = vmatprep.subr.mxu0 0.0
        %715 = vmatpush2.msra.mxu0 0.0
        %716 = vmatprep.subr.mxu0 0.0
        %717 = vmatpush2.msra.mxu0 0.0
        %718 = vmatprep.subr.mxu0 0.0
        %719 = vmatpush2.msra.mxu0 0.0
        %720 = vmatprep.subr.mxu0 0.0
        %721 = vmatpush2.msra.mxu0 0.0
        %722 = vmatprep.subr.mxu0 0.0
        %723 = vmatpush2.msra.mxu0 0.0
        %724 = vmatprep.mubr.f32.mxu0 0.0
        %725 = vmatmul.mubr.f32.gmra.mxu0 %v463
        %v726 = vpop.f32.mrf.mxu0
        %v727 = vadd.f32 %v299, %v726
        %v728 = vpop.f32.mrf.mxu0
        %729 = vmatprep.mubr.f32.mxu0 0.0
        %730 = vmatmul.mubr.f32.gmra.mxu0 %v466
        %v731 = vpop.f32.mrf.mxu0
        %v732 = vadd.f32 %v300, %v731
        %v733 = vpop.f32.mrf.mxu0
        %734 = vmatprep.mubr.f32.mxu0 0.0
        %735 = vmatmul.mubr.f32.gmra.mxu0 %v469
        %v736 = vpop.f32.mrf.mxu0
        %v737 = vadd.f32 %v301, %v736
        %v738 = vpop.f32.mrf.mxu0
        %739 = vmatprep.mubr.f32.mxu0 0.0
        %740 = vmatmul.mubr.f32.gmra.mxu0 %v472
        %v741 = vpop.f32.mrf.mxu0
        %v742 = vadd.f32 %v302, %v741
        %v743 = vpop.f32.mrf.mxu0
        %744 = vdwg.mxu0
        %v745 = vmul.f32 %v727, 0.16666667
        %v746 = vmul.f32 %v732, 0.16666667
        %v747 = vmul.f32 %v737, 0.16666667
        %v748 = vmul.f32 %v742, 0.16666667
        %v749 = vadd.f32 %v656, %v745
        %v750 = vadd.f32 %v657, %v746
        %v751 = vadd.f32 %v658, %v747
        %v752 = vadd.f32 %v659, %v748
        %753 = vmatprep.subr.mxu0 0.0
        %754 = vmatpush1.msra.mxu0 0.0
        %755 = vmatprep.subr.mxu0 0.0
        %756 = vmatpush1.msra.mxu0 0.0
        %757 = vmatprep.subr.mxu0 0.0
        %758 = vmatpush1.msra.mxu0 0.0
        %759 = vmatprep.subr.mxu0 0.0
        %760 = vmatpush1.msra.mxu0 0.0
        %761 = vmatprep.subr.mxu0 0.0
        %762 = vmatpush1.msra.mxu0 0.0
        %763 = vmatprep.subr.mxu0 0.0
        %764 = vmatpush1.msra.mxu0 0.0
        %765 = vmatprep.subr.mxu0 0.0
        %766 = vmatpush1.msra.mxu0 0.0
        %767 = vmatprep.subr.mxu0 0.0
        %768 = vmatpush1.msra.mxu0 0.0
        %769 = vmatprep.subr.mxu0 0.0
        %770 = vmatpush1.msra.mxu0 0.0
        %771 = vmatprep.subr.mxu0 0.0
        %772 = vmatpush1.msra.mxu0 0.0
        %773 = vmatprep.subr.mxu0 0.0
        %774 = vmatpush1.msra.mxu0 0.0
        %775 = vmatprep.subr.mxu0 0.0
        %776 = vmatpush1.msra.mxu0 0.0
        %777 = vmatprep.subr.mxu0 0.0
        %778 = vmatpush1.msra.mxu0 %v752
        %779 = vmatprep.subr.mxu0 0.0
        %780 = vmatpush1.msra.mxu0 %v751
        %781 = vmatprep.subr.mxu0 0.0
        %782 = vmatpush1.msra.mxu0 %v750
        %783 = vmatprep.subr.mxu0 0.0
        %784 = vmatpush1.msra.mxu0 %v749
        %785 = vmatprep.subr.mxu0 0.0
        %786 = vmatpush2.msra.mxu0 0.0
        %787 = vmatprep.subr.mxu0 0.0
        %788 = vmatpush2.msra.mxu0 0.0
        %789 = vmatprep.subr.mxu0 0.0
        %790 = vmatpush2.msra.mxu0 0.0
        %791 = vmatprep.subr.mxu0 0.0
        %792 = vmatpush2.msra.mxu0 0.0
        %793 = vmatprep.subr.mxu0 0.0
        %794 = vmatpush2.msra.mxu0 0.0
        %795 = vmatprep.subr.mxu0 0.0
        %796 = vmatpush2.msra.mxu0 0.0
        %797 = vmatprep.subr.mxu0 0.0
        %798 = vmatpush2.msra.mxu0 0.0
        %799 = vmatprep.subr.mxu0 0.0
        %800 = vmatpush2.msra.mxu0 0.0
        %801 = vmatprep.subr.mxu0 0.0
        %802 = vmatpush2.msra.mxu0 0.0
        %803 = vmatprep.subr.mxu0 0.0
        %804 = vmatpush2.msra.mxu0 0.0
        %805 = vmatprep.subr.mxu0 0.0
        %806 = vmatpush2.msra.mxu0 0.0
        %807 = vmatprep.subr.mxu0 0.0
        %808 = vmatpush2.msra.mxu0 0.0
        %809 = vmatprep.subr.mxu0 0.0
        %810 = vmatpush2.msra.mxu0 0.0
        %811 = vmatprep.subr.mxu0 0.0
        %812 = vmatpush2.msra.mxu0 0.0
        %813 = vmatprep.subr.mxu0 0.0
        %814 = vmatpush2.msra.mxu0 0.0
        %815 = vmatprep.subr.mxu0 0.0
        %816 = vmatpush2.msra.mxu0 0.0
        %817 = vmatprep.mubr.f32.mxu0 0.0
        %818 = vmatmul.mubr.f32.gmra.mxu0 %v463
        %v819 = vpop.f32.mrf.mxu0
        %v820 = vadd.f32 %v299, %v819
        %v821 = vpop.f32.mrf.mxu0
        %822 = vmatprep.mubr.f32.mxu0 0.0
        %823 = vmatmul.mubr.f32.gmra.mxu0 %v466
        %v824 = vpop.f32.mrf.mxu0
        %v825 = vadd.f32 %v300, %v824
        %v826 = vpop.f32.mrf.mxu0
        %827 = vmatprep.mubr.f32.mxu0 0.0
        %828 = vmatmul.mubr.f32.gmra.mxu0 %v469
        %v829 = vpop.f32.mrf.mxu0
        %v830 = vadd.f32 %v301, %v829
        %v831 = vpop.f32.mrf.mxu0
        %832 = vmatprep.mubr.f32.mxu0 0.0
        %833 = vmatmul.mubr.f32.gmra.mxu0 %v472
        %v834 = vpop.f32.mrf.mxu0
        %v835 = vadd.f32 %v302, %v834
        %v836 = vpop.f32.mrf.mxu0
        %837 = vdwg.mxu0
        %v838 = vmul.f32 %v820, 0.16666667
        %v839 = vmul.f32 %v825, 0.16666667
        %v840 = vmul.f32 %v830, 0.16666667
        %v841 = vmul.f32 %v835, 0.16666667
        %v842 = vadd.f32 %v749, %v838
        %v843 = vadd.f32 %v750, %v839
        %v844 = vadd.f32 %v751, %v840
        %v845 = vadd.f32 %v752, %v841
        %846 = vmatprep.subr.mxu0 0.0
        %847 = vmatpush1.msra.mxu0 0.0
        %848 = vmatprep.subr.mxu0 0.0
        %849 = vmatpush1.msra.mxu0 0.0
        %850 = vmatprep.subr.mxu0 0.0
        %851 = vmatpush1.msra.mxu0 0.0
        %852 = vmatprep.subr.mxu0 0.0
        %853 = vmatpush1.msra.mxu0 0.0
        %854 = vmatprep.subr.mxu0 0.0
        %855 = vmatpush1.msra.mxu0 0.0
        %856 = vmatprep.subr.mxu0 0.0
        %857 = vmatpush1.msra.mxu0 0.0
        %858 = vmatprep.subr.mxu0 0.0
        %859 = vmatpush1.msra.mxu0 0.0
        %860 = vmatprep.subr.mxu0 0.0
        %861 = vmatpush1.msra.mxu0 0.0
        %862 = vmatprep.subr.mxu0 0.0
        %863 = vmatpush1.msra.mxu0 0.0
        %864 = vmatprep.subr.mxu0 0.0
        %865 = vmatpush1.msra.mxu0 0.0
        %866 = vmatprep.subr.mxu0 0.0
        %867 = vmatpush1.msra.mxu0 0.0
        %868 = vmatprep.subr.mxu0 0.0
        %869 = vmatpush1.msra.mxu0 0.0
        %870 = vmatprep.subr.mxu0 0.0
        %871 = vmatpush1.msra.mxu0 %v845
        %872 = vmatprep.subr.mxu0 0.0
        %873 = vmatpush1.msra.mxu0 %v844
        %874 = vmatprep.subr.mxu0 0.0
        %875 = vmatpush1.msra.mxu0 %v843
        %876 = vmatprep.subr.mxu0 0.0
        %877 = vmatpush1.msra.mxu0 %v842
        %878 = vmatprep.subr.mxu0 0.0
        %879 = vmatpush2.msra.mxu0 0.0
        %880 = vmatprep.subr.mxu0 0.0
        %881 = vmatpush2.msra.mxu0 0.0
        %882 = vmatprep.subr.mxu0 0.0
        %883 = vmatpush2.msra.mxu0 0.0
        %884 = vmatprep.subr.mxu0 0.0
        %885 = vmatpush2.msra.mxu0 0.0
        %886 = vmatprep.subr.mxu0 0.0
        %887 = vmatpush2.msra.mxu0 0.0
        %888 = vmatprep.subr.mxu0 0.0
        %889 = vmatpush2.msra.mxu0 0.0
        %890 = vmatprep.subr.mxu0 0.0
        %891 = vmatpush2.msra.mxu0 0.0
        %892 = vmatprep.subr.mxu0 0.0
        %893 = vmatpush2.msra.mxu0 0.0
        %894 = vmatprep.subr.mxu0 0.0
        %895 = vmatpush2.msra.mxu0 0.0
        %896 = vmatprep.subr.mxu0 0.0
        %897 = vmatpush2.msra.mxu0 0.0
        %898 = vmatprep.subr.mxu0 0.0
        %899 = vmatpush2.msra.mxu0 0.0
        %900 = vmatprep.subr.mxu0 0.0
        %901 = vmatpush2.msra.mxu0 0.0
        %902 = vmatprep.subr.mxu0 0.0
        %903 = vmatpush2.msra.mxu0 0.0
        %904 = vmatprep.subr.mxu0 0.0
        %905 = vmatpush2.msra.mxu0 0.0
        %906 = vmatprep.subr.mxu0 0.0
        %907 = vmatpush2.msra.mxu0 0.0
        %908 = vmatprep.subr.mxu0 0.0
        %909 = vmatpush2.msra.mxu0 0.0
        %910 = vmatprep.mubr.f32.mxu0 0.0
        %911 = vmatmul.mubr.f32.gmra.mxu0 %v463
        %v912 = vpop.f32.mrf.mxu0
        %v913 = vadd.f32 %v299, %v912
        %v914 = vpop.f32.mrf.mxu0
        %915 = vmatprep.mubr.f32.mxu0 0.0
        %916 = vmatmul.mubr.f32.gmra.mxu0 %v466
        %v917 = vpop.f32.mrf.mxu0
        %v918 = vadd.f32 %v300, %v917
        %v919 = vpop.f32.mrf.mxu0
        %920 = vmatprep.mubr.f32.mxu0 0.0
        %921 = vmatmul.mubr.f32.gmra.mxu0 %v469
        %v922 = vpop.f32.mrf.mxu0
        %v923 = vadd.f32 %v301, %v922
        %v924 = vpop.f32.mrf.mxu0
        %925 = vmatprep.mubr.f32.mxu0 0.0
        %926 = vmatmul.mubr.f32.gmra.mxu0 %v472
        %v927 = vpop.f32.mrf.mxu0
        %v928 = vadd.f32 %v302, %v927
        %v929 = vpop.f32.mrf.mxu0
        %930 = vdwg.mxu0
        %v931 = vmul.f32 %v913, 0.16666667
        %v932 = vmul.f32 %v918, 0.16666667
        %v933 = vmul.f32 %v923, 0.16666667
        %v934 = vmul.f32 %v928, 0.16666667
        %v935 = vadd.f32 %v842, %v931
        %v936 = vadd.f32 %v843, %v932
        %v937 = vadd.f32 %v844, %v933
        %v938 = vadd.f32 %v845, %v934
        %939 = vmatprep.subr.mxu0 0.0
        %940 = vmatpush1.msra.mxu0 0.0
        %941 = vmatprep.subr.mxu0 0.0
        %942 = vmatpush1.msra.mxu0 0.0
        %943 = vmatprep.subr.mxu0 0.0
        %944 = vmatpush1.msra.mxu0 0.0
        %945 = vmatprep.subr.mxu0 0.0
        %946 = vmatpush1.msra.mxu0 0.0
        %947 = vmatprep.subr.mxu0 0.0
        %948 = vmatpush1.msra.mxu0 0.0
        %949 = vmatprep.subr.mxu0 0.0
        %950 = vmatpush1.msra.mxu0 0.0
        %951 = vmatprep.subr.mxu0 0.0
        %952 = vmatpush1.msra.mxu0 0.0
        %953 = vmatprep.subr.mxu0 0.0
        %954 = vmatpush1.msra.mxu0 0.0
        %955 = vmatprep.subr.mxu0 0.0
        %956 = vmatpush1.msra.mxu0 0.0
        %957 = vmatprep.subr.mxu0 0.0
        %958 = vmatpush1.msra.mxu0 0.0
        %959 = vmatprep.subr.mxu0 0.0
        %960 = vmatpush1.msra.mxu0 0.0
        %961 = vmatprep.subr.mxu0 0.0
        %962 = vmatpush1.msra.mxu0 0.0
        %963 = vmatprep.subr.mxu0 0.0
        %964 = vmatpush1.msra.mxu0 %v938
        %965 = vmatprep.subr.mxu0 0.0
        %966 = vmatpush1.msra.mxu0 %v937
        %967 = vmatprep.subr.mxu0 0.0
        %968 = vmatpush1.msra.mxu0 %v936
        %969 = vmatprep.subr.mxu0 0.0
        %970 = vmatpush1.msra.mxu0 %v935
        %971 = vmatprep.subr.mxu0 0.0
        %972 = vmatpush2.msra.mxu0 0.0
        %973 = vmatprep.subr.mxu0 0.0
        %974 = vmatpush2.msra.mxu0 0.0
        %975 = vmatprep.subr.mxu0 0.0
        %976 = vmatpush2.msra.mxu0 0.0
        %977 = vmatprep.subr.mxu0 0.0
        %978 = vmatpush2.msra.mxu0 0.0
        %979 = vmatprep.subr.mxu0 0.0
        %980 = vmatpush2.msra.mxu0 0.0
        %981 = vmatprep.subr.mxu0 0.0
        %982 = vmatpush2.msra.mxu0 0.0
        %983 = vmatprep.subr.mxu0 0.0
        %984 = vmatpush2.msra.mxu0 0.0
        %985 = vmatprep.subr.mxu0 0.0
        %986 = vmatpush2.msra.mxu0 0.0
        %987 = vmatprep.subr.mxu0 0.0
        %988 = vmatpush2.msra.mxu0 0.0
        %989 = vmatprep.subr.mxu0 0.0
        %990 = vmatpush2.msra.mxu0 0.0
        %991 = vmatprep.subr.mxu0 0.0
        %992 = vmatpush2.msra.mxu0 0.0
        %993 = vmatprep.subr.mxu0 0.0
        %994 = vmatpush2.msra.mxu0 0.0
        %995 = vmatprep.subr.mxu0 0.0
        %996 = vmatpush2.msra.mxu0 0.0
        %997 = vmatprep.subr.mxu0 0.0
        %998 = vmatpush2.msra.mxu0 0.0
        %999 = vmatprep.subr.mxu0 0.0
        %1000 = vmatpush2.msra.mxu0 0.0
        %1001 = vmatprep.subr.mxu0 0.0
        %1002 = vmatpush2.msra.mxu0 0.0
        %1003 = vmatprep.mubr.f32.mxu0 0.0
        %1004 = vmatmul.mubr.f32.gmra.mxu0 %v463
        %v1005 = vpop.f32.mrf.mxu0
        %v1006 = vadd.f32 %v299, %v1005
        %v1007 = vpop.f32.mrf.mxu0
        %1008 = vmatprep.mubr.f32.mxu0 0.0
        %1009 = vmatmul.mubr.f32.gmra.mxu0 %v466
        %v1010 = vpop.f32.mrf.mxu0
        %v1011 = vadd.f32 %v300, %v1010
        %v1012 = vpop.f32.mrf.mxu0
        %1013 = vmatprep.mubr.f32.mxu0 0.0
        %1014 = vmatmul.mubr.f32.gmra.mxu0 %v469
        %v1015 = vpop.f32.mrf.mxu0
        %v1016 = vadd.f32 %v301, %v1015
        %v1017 = vpop.f32.mrf.mxu0
        %1018 = vmatprep.mubr.f32.mxu0 0.0
        %1019 = vmatmul.mubr.f32.gmra.mxu0 %v472
        %v1020 = vpop.f32.mrf.mxu0
        %v1021 = vadd.f32 %v302, %v1020
        %v1022 = vpop.f32.mrf.mxu0
        %1023 = vdwg.mxu0
        %v1024 = vmul.f32 %v1006, 0.16666667
        %v1025 = vmul.f32 %v1011, 0.16666667
        %v1026 = vmul.f32 %v1016, 0.16666667
        %v1027 = vmul.f32 %v1021, 0.16666667
        %v1028 = vadd.f32 %v935, %v1024
        %v1029 = vadd.f32 %v936, %v1025
        %v1030 = vadd.f32 %v937, %v1026
        %v1031 = vadd.f32 %v938, %v1027
        %v1032 = vmax.f32 %v1028, 0.0
        %v1033 = vmax.f32 %v1029, 0.0
        %v1034 = vmax.f32 %v1030, 0.0
        %v1035 = vmax.f32 %v1031, 0.0
        %v1036 = vmul.f32 %v1032, %v303
        %v1037 = vmul.f32 %v1033, %v304
        %v1038 = vmul.f32 %v1034, %v305
        %v1039 = vmul.f32 %v1035, %v306
        %v1040 = vadd.f32 %v1036, %v1037
        %v1041 = vadd.f32 %v1040, %v1038
        %v1042 = vadd.f32 %v1041, %v1039
        %v1043 = vrot.slane %v1042, 4
        %v1044 = vadd.f32 %v1042, %v1043
        %v1045 = vrot.slane %v1044, 2
        %v1046 = vadd.f32 %v1044, %v1045
        %v1047 = vrot.slane %v1046, 1
        %v1048 = vadd.f32 %v1046, %v1047
        %s1049 = sld [smem:[#allocation2]]
        %v1050 = vstv %s1049
        %v1051 = vadd.f32 %v1048, %v1050
        %v1052 = vsub.f32 0.0, %v1051
        %v1053 = vmul.f32 %v1052, 1.442695
        %v1054 = vpow.pop %v1053
        %v1055 = vadd.f32 %v1054, 1.0
        %v1056 = vrcp.pop %v1055
        %v1057 = vmul.f32 1.0, %v1056
        %1058 = vst [vmem:[%s272] sm:$0x1] %v1057
        %s1059 = sand.u32 %s182, 1
        %s1060 = scalar_lea.sflag [#allocation4], %s1059
        %s1061 = sand.u32 %s182, 1
        %s1062 = scalar_lea.vmem [#allocation3], %s1061
        // Predicated region
        $region49: #{tpu_custom_call.1} parent=47 // pred_check
          %p1063 = pneg %p192
        $region50: #{tpu_custom_call.1} parent=47 // pred_check_branch
          %1065 = sbr.rel (%p1063) target = $region52
        $region51: #{tpu_custom_call.1} parent=47 // pred_region
          %s1067 = ssub.s32 16, 16
          %1068 = vsyncadd %s1060, %s1067
          %s1069 = smul.addr %s22, 16
          %s1070 = scalar_lea.hbm %s7, %s1069
          %s1072 = sshll.u32 %s1062, 4
          %s1073 = int_to_ptr.vmem [resolvable:$true] %s1072
          %1075 = dma.vmem_to_hbm [thread:$0]  %s1073, 16, %s1070, %s1060
        $region52: #{tpu_custom_call.1} parent=47 // pred_fallthru
          _
      $region48: #{tpu_custom_call.1} parent=5 // pred_fallthru
        _
      %p1076 = scmp.le.s32.totalorder 2, %s17
      // Predicated region
      $region53: #{tpu_custom_call.1} parent=5 // pred_check
        %p1077 = pneg %p1076
      $region54: #{tpu_custom_call.1} parent=5 // pred_check_branch
        %1079 = sbr.rel (%p1077) target = $region56
      $region55: #{tpu_custom_call.1} parent=5 // pred_region
        %s1080 = ssub.s32 %s17, 2
        // Predicated region
        $region57: #{tpu_custom_call.1} parent=55 // pred_check
          %p1081 = pneg %p198
        $region58: #{tpu_custom_call.1} parent=55 // pred_check_branch
          %1083 = sbr.rel (%p1081) target = $region60
        $region59: #{tpu_custom_call.1} parent=55 // pred_region
          %s1084 = sand.u32 %s183, 1
          %s1085 = scalar_lea.sflag [#allocation4], %s1084
          %s1086 = sand.u32 %s183, 1
          %s1087 = scalar_lea.vmem [#allocation3], %s1086
          %1088 = dma.done %s1085, 16
        $region60: #{tpu_custom_call.1} parent=55 // pred_fallthru
          _
      $region56: #{tpu_custom_call.1} parent=5 // pred_fallthru
        _
    $region6: #{tpu_custom_call.1} parent=1 // loop_footer
      %s21 = sadd.s32 1, %s17
    $region7: #{tpu_custom_call.1} parent=1 // loop_footer_branch
      %16 = sbr.rel target = $region3
    $region8: #{tpu_custom_call.1} parent=1 // loop_exit
      _
    %1089 = vsyncpa [#allocation4], 1
    %s1090 = scalar_lea.sflag [#allocation4], 1
    %1091 = vsyncpa %s1090, 1

</llo_original>
